<compile_context>
chip_gen: v5e
topology: v5e:2x2
jax: 0.10.0
libtpu: 0.0.40
codegen_flags: <defaults>
</compile_context>

<pallas_src>
import jax
import jax.numpy as jnp
from jax.experimental import pallas as pl
from jax.experimental.pallas import tpu as pltpu

EPS = 1e-5                         # torch.nn.BatchNorm1d default eps
DEFAULT_VMEM_LIMIT = 32 * 1024 * 1024


def _largest_divisor_leq(n, cap):
    cap = max(1, min(n, cap))
    for d in range(cap, 0, -1):
        if n % d == 0:
            return d
    return 1


# ---------------------------------------------------------------------------
# Kernel 1: per-point feature stub + running max-pool over N (streamed).
# ---------------------------------------------------------------------------
def _make_feature_pool_kernel(dk, n_chunks):
    def kernel(points_ref, wft_ref, out_ref, feat_acc):
        n_idx = pl.program_id(1)

        @pl.when(n_idx == 0)
        def _():
            feat_acc[...] = jnp.full(feat_acc.shape, -jnp.inf, feat_acc.dtype)

        # Coordinate planes: (bt, 1, nt), N on the 128-lane axis (lane-dense,
        # unmasked loads).  Hoisted out of the chunk loop (~3 vregs live).
        px = points_ref[:, 0:1, :]
        py = points_ref[:, 1:2, :]
        pz = points_ref[:, 2:3, :]

        # Static chunk loop over dim_k (sublane chunks).  Each iteration's
        # (bt, dk, nt) intermediate dies into the scratch store below, keeping
        # vreg pressure bounded regardless of nt / dim_k.
        for c in range(n_chunks):
            k0 = c * dk
            w = wft_ref[k0:k0 + dk, :]                        # (dk, 3), K on sublanes
            pf = px * w[:, 0:1] + py * w[:, 1:2] + pz * w[:, 2:3]   # (bt, dk, nt)
            cmax = jnp.max(pf, axis=-1)                       # XLU lane reduce -> (bt, dk)
            feat_acc[:, k0:k0 + dk] = jnp.maximum(feat_acc[:, k0:k0 + dk], cmax)

        @pl.when(n_idx == pl.num_programs(1) - 1)
        def _():
            out_ref[...] = feat_acc[...][:, None, :].astype(out_ref.dtype)

    return kernel


def _feature_pool(points_t, wft, *, bt, nt, dk, vmem_limit_bytes):
    """points_t: (B, 3, N) f32, wft: (dim_k, 3) f32 -> pooled feature (B, dim_k) f32."""
    B, _, N = points_t.shape
    dim_k = wft.shape[0]
    n_chunks = dim_k // dk
    kernel = _make_feature_pool_kernel(dk, n_chunks)

    out = pl.pallas_call(
        kernel,
        out_shape=jax.ShapeDtypeStruct((B, 1, dim_k), jnp.float32),
        grid=(B // bt, N // nt),
        in_specs=[
            pl.BlockSpec((bt, 3, nt), lambda b, n: (b, 0, n)),    # streamed points tile
            pl.BlockSpec((dim_k, 3), lambda b, n: (0, 0)),        # resident stub weight
        ],
        out_specs=pl.BlockSpec((bt, 1, dim_k), lambda b, n: (b, 0, 0)),
        scratch_shapes=[pltpu.VMEM((bt, dim_k), jnp.float32)],    # running max
        compiler_params=pltpu.CompilerParams(
            dimension_semantics=("parallel", "arbitrary"),        # reduction axis last
            vmem_limit_bytes=vmem_limit_bytes),
    )(points_t, wft)
    return out.reshape(B, dim_k)


# ---------------------------------------------------------------------------
# Kernel 2: classifier head (BN already folded into the Linears).
# ---------------------------------------------------------------------------
def _head_kernel(feat_ref, w1_ref, b1_ref, w2_ref, b2_ref, w3_ref, b3_ref, out_ref):
    feat = feat_ref[...].astype(w1_ref.dtype)
    h1 = jnp.dot(feat, w1_ref[...], preferred_element_type=jnp.float32)
    h1 = jnp.maximum(h1 + b1_ref[...], 0.0)
    h2 = jnp.dot(h1.astype(w2_ref.dtype), w2_ref[...], preferred_element_type=jnp.float32)
    h2 = jnp.maximum(h2 + b2_ref[...], 0.0)
    out = jnp.dot(h2.astype(w3_ref.dtype), w3_ref[...], preferred_element_type=jnp.float32)
    out_ref[...] = (out + b3_ref[...]).astype(out_ref.dtype)


def _classifier_head(feat, w1, b1, w2, b2, w3, b3, *, bt_h, vmem_limit_bytes):
    B, _ = feat.shape
    nc_pad = w3.shape[1]

    def resident(arr):
        nd = arr.ndim
        return pl.BlockSpec(arr.shape, lambda i, _nd=nd: (0,) * _nd)

    return pl.pallas_call(
        _head_kernel,
        out_shape=jax.ShapeDtypeStruct((B, nc_pad), jnp.float32),
        grid=(B // bt_h,),
        in_specs=[pl.BlockSpec((bt_h, feat.shape[1]), lambda i: (i, 0)),
                  resident(w1), resident(b1),
                  resident(w2), resident(b2),
                  resident(w3), resident(b3)],
        out_specs=pl.BlockSpec((bt_h, nc_pad), lambda i: (i, 0)),   # lane-dense logits
        compiler_params=pltpu.CompilerParams(
            dimension_semantics=("arbitrary",),
            vmem_limit_bytes=vmem_limit_bytes),
    )(feat, w1, b1, w2, b2, w3, b3)


# ---------------------------------------------------------------------------
# Full forward.
# ---------------------------------------------------------------------------
def mamba3d_classifier(points, params, *, n_tile=None, batch_tile=None,
                       k_chunk=None, head_dtype=jnp.float32,
                       vmem_limit_bytes=DEFAULT_VMEM_LIMIT):
    """points: [B, N, 3] -> logits [B, num_c] float32 (BatchNorm in eval mode)."""
    B, N, three = points.shape
    assert three == 3
    dim_k = params["wf"].shape[1]
    num_c = params["w3"].shape[1]
    f32 = jnp.float32

    # ----- tiling choices -----
    # Batch tile: keep >= 2 steps on the parallel axis (v7x megacore) and small
    # so the per-chunk live set stays tiny.
    bt = _largest_divisor_leq(B, max(1, min(4, B // 2))) if batch_tile is None else batch_tile
    assert B % bt == 0, "batch must be divisible by the batch tile"

    # N tile: lane-aligned, 128..1024 (amortizes ~0.35us/step without blowing VMEM).
    if n_tile is None:
        nt = N
        for cand in (1024, 512, 256, 128):
            if N % cand == 0:
                nt = cand
                break
    else:
        nt = n_tile
    assert N % nt == 0, "N must be divisible by the N tile"
    assert nt == N or nt % 128 == 0, "N tile must be a multiple of 128 (or N itself)"

    # dim_k chunk: keep bt*dk*nt f32 live values within ~half the vreg file.
    if k_chunk is None:
        budget = 128 * 1024
        divisors = [d for d in range(1, dim_k + 1) if dim_k % d == 0]
        dk = max(d for d in divisors if d <= 8 or bt * d * nt * 4 <= budget)
    else:
        dk = k_chunk
    assert dim_k % dk == 0, "dim_k chunk must divide dim_k"

    # ----- fold BatchNorm (running stats, eval mode) into the Linears -----
    s1 = params["g1"].astype(f32) * jax.lax.rsqrt(params["v1"].astype(f32) + EPS)
    w1 = params["w1"].astype(f32) * s1
    b1 = (params["b1"].astype(f32) - params["m1"].astype(f32)) * s1 + params["be1"].astype(f32)
    # the stub bias bf is applied after the max-pool, so it folds exactly into b1
    b1 = b1 + params["bf"].astype(f32) @ w1
    s2 = params["g2"].astype(f32) * jax.lax.rsqrt(params["v2"].astype(f32) + EPS)
    w2 = params["w2"].astype(f32) * s2
    b2 = (params["b2"].astype(f32) - params["m2"].astype(f32)) * s2 + params["be2"].astype(f32)

    # ----- lane-pad logits to a multiple of 128 (unmasked stores) -----
    nc_pad = ((num_c + 127) // 128) * 128
    w3 = jnp.pad(params["w3"].astype(f32), ((0, 0), (0, nc_pad - num_c)))
    b3 = jnp.pad(params["b3"].astype(f32), ((0, 0), (0, nc_pad - num_c)))

    # optional reduced-precision storage of the head weights (f32 accumulation);
    # points / wf stay f32 to preserve the pooled feature accuracy.
    w1, w2, w3 = (x.astype(head_dtype) for x in (w1, w2, w3))

    # ----- streaming stub + max-pool -----
    points_t = jnp.transpose(points.astype(f32), (0, 2, 1))   # (B, 3, N): N on lanes
    wft = jnp.transpose(params["wf"].astype(f32), (1, 0))     # (dim_k, 3): K on sublanes
    feat = _feature_pool(points_t, wft, bt=bt, nt=nt, dk=dk,
                         vmem_limit_bytes=vmem_limit_bytes)

    # ----- classifier head (runs once per batch tile; weights resident) -----
    if B <= 256:
        bt_h = B
    else:
        bt_h = B
        for cand in (256, 128, 64, 32, 16, 8):
            if B % cand == 0:
                bt_h = cand
                break
    out = _classifier_head(feat, w1, b1, w2, b2, w3, b3,
                           bt_h=bt_h, vmem_limit_bytes=vmem_limit_bytes)
    return out[:, :num_c]


# ---------------------------------------------------------------------------
# Synthetic parameters + pure-JAX reference.
# ---------------------------------------------------------------------------
def init_params(key, dim_k, num_c):
    """Deterministic synthetic parameters (shapes follow the module __init__)."""
    ks = jax.random.split(key, 16)
    f32 = jnp.float32

    def lin(kw, kb, fan_in, fan_out):
        bound = 1.0 / jnp.sqrt(float(fan_in))
        w = jax.random.uniform(kw, (fan_in, fan_out), f32, -bound, bound)
        b = jax.random.uniform(kb, (1, fan_out), f32, -bound, bound)
        return w, b

    wf, bf = lin(ks[0], ks[1], 3, dim_k)          # feature stub
    w1, b1 = lin(ks[2], ks[3], dim_k, 512)
    w2, b2 = lin(ks[4], ks[5], 512, 256)
    w3, b3 = lin(ks[6], ks[7], 256, num_c)

    def bn(kg, kb, km, kv, c):
        g = 1.0 + 0.1 * jax.random.normal(kg, (1, c), f32)
        be = 0.1 * jax.random.normal(kb, (1, c), f32)
        m = 0.1 * jax.random.normal(km, (1, c), f32)
        v = jax.random.uniform(kv, (1, c), f32, 0.5, 1.5)
        return g, be, m, v

    g1, be1, m1, v1 = bn(ks[8], ks[9], ks[10], ks[11], 512)
    g2, be2, m2, v2 = bn(ks[12], ks[13], ks[14], ks[15], 256)

    return dict(
        wf=wf, bf=bf,
        w1=w1, b1=b1, g1=g1, be1=be1, m1=m1, v1=v1,
        w2=w2, b2=b2, g2=g2, be2=be2, m2=m2, v2=v2,
        w3=w3, b3=b3,
    )


def _reference(points, params):
    """Pure-JAX reference (same math, BatchNorm in eval mode)."""
    pf = jnp.einsum("bnd,dk->bnk", points, params["wf"])
    feat = jnp.max(pf, axis=1) + params["bf"]
    h1 = feat @ params["w1"] + params["b1"]
    h1 = (h1 - params["m1"]) * jax.lax.rsqrt(params["v1"] + EPS) * params["g1"] + params["be1"]
    h1 = jnp.maximum(h1, 0.0)
    h2 = h1 @ params["w2"] + params["b2"]
    h2 = (h2 - params["m2"]) * jax.lax.rsqrt(params["v2"] + EPS) * params["g2"] + params["be2"]
    h2 = jnp.maximum(h2, 0.0)
    return h2 @ params["w3"] + params["b3"]


if __name__ == "__main__":
    B, N, dim_k, num_c = 2, 256, 32, 8

    key = jax.random.PRNGKey(0)
    k_pts, k_par = jax.random.split(key)
    points = jax.random.normal(k_pts, (B, N, 3), jnp.float32)
    params = init_params(k_par, dim_k, num_c)

    # n_tile=128  -> two N grid steps (exercises the running-max accumulator)
    # k_chunk=16  -> two dim_k chunks (exercises the bounded-liveness inner loop)
    # batch_tile default -> 1, giving two parallel batch steps.
    out = mamba3d_classifier(points, params, n_tile=128, k_chunk=16)
    out = jax.block_until_ready(out)

    assert out.shape == (B, num_c), out.shape
    assert out.dtype == jnp.float32
    assert bool(jnp.all(jnp.isfinite(out)))

    ref = _reference(points, params)
    assert bool(jnp.allclose(out, ref, rtol=1e-4, atol=1e-4)), (
        float(jnp.max(jnp.abs(out - ref))))

    print("KERNEL_OK")
</pallas_src>

<mosaic_0001>
module attributes {stable_mosaic.version = 11 : i64} {
  func.func @kernel(%arg0: i32, %arg1: i32, %arg2: memref<1x3x128xf32, #tpu.memory_space<vmem>>, %arg3: memref<32x3xf32, #tpu.memory_space<vmem>>, %arg4: memref<1x1x32xf32, #tpu.memory_space<vmem>>, %arg5: memref<1x32xf32, #tpu.memory_space<vmem>>) attributes {dimension_semantics = [#tpu.dimension_semantics<parallel>, #tpu.dimension_semantics<arbitrary>], iteration_bounds = array<i64: 2, 2>, scalar_prefetch = 0 : i64, scratch_operands = 1 : i64, tpu.core_type = #tpu.core_type<tc>, window_params = [{transform_indices = @transform_0, window_bounds = array<i64: 1, 3, 128>}, {pipeline_mode = #tpu.pipeline_mode<synchronous>, transform_indices = @transform_1, window_bounds = array<i64: 32, 3>}, {transform_indices = @transform_2, window_bounds = array<i64: 1, 1, 32>}]} {
    %c0_i32 = arith.constant 0 : i32
    %0 = arith.cmpi eq, %arg1, %c0_i32 : i32
    %1 = arith.extui %0 : i1 to i32
    %c0_i32_0 = arith.constant 0 : i32
    %2 = arith.cmpi ne, %1, %c0_i32_0 : i32
    scf.if %2 {
      %cst_20 = arith.constant 0xFF800000 : f32
      %53 = vector.broadcast %cst_20 : f32 to vector<1x32xf32>
      %c0_21 = arith.constant 0 : index
      %c0_22 = arith.constant 0 : index
      %54 = vector.load %arg5[%c0_21, %c0_22] : memref<1x32xf32, #tpu.memory_space<vmem>>, vector<1x32xf32>
      tpu.vector_store %arg5[%c0_21, %c0_22], %53 {strides = array<i32>} : memref<1x32xf32, #tpu.memory_space<vmem>>, vector<1x32xf32>,
    } else {
    }
    %c0 = arith.constant 0 : index
    %c0_1 = arith.constant 0 : index
    %c0_2 = arith.constant 0 : index
    %3 = vector.load %arg2[%c0, %c0_1, %c0_2] : memref<1x3x128xf32, #tpu.memory_space<vmem>>, vector<1x1x128xf32>
    %c0_3 = arith.constant 0 : index
    %c1 = arith.constant 1 : index
    %c0_4 = arith.constant 0 : index
    %4 = vector.load %arg2[%c0_3, %c1, %c0_4] : memref<1x3x128xf32, #tpu.memory_space<vmem>>, vector<1x1x128xf32>
    %c0_5 = arith.constant 0 : index
    %c2 = arith.constant 2 : index
    %c0_6 = arith.constant 0 : index
    %5 = vector.load %arg2[%c0_5, %c2, %c0_6] : memref<1x3x128xf32, #tpu.memory_space<vmem>>, vector<1x1x128xf32>
    %c0_7 = arith.constant 0 : index
    %c0_8 = arith.constant 0 : index
    %6 = vector.load %arg3[%c0_7, %c0_8] : memref<32x3xf32, #tpu.memory_space<vmem>>, vector<16x3xf32>
    %7 = vector.extract_strided_slice %6 {offsets = [0, 0], sizes = [16, 1], strides = [1, 1]} : vector<16x3xf32> to vector<16x1xf32>
    %8 = vector.shape_cast %7 : vector<16x1xf32> to vector<1x16x1xf32>
    %9 = vector.broadcast %3 : vector<1x1x128xf32> to vector<1x16x128xf32>
    %10 = vector.broadcast %8 : vector<1x16x1xf32> to vector<1x16x128xf32>
    %11 = arith.mulf %9, %10 : vector<1x16x128xf32>
    %12 = vector.extract_strided_slice %6 {offsets = [0, 1], sizes = [16, 1], strides = [1, 1]} : vector<16x3xf32> to vector<16x1xf32>
    %13 = vector.shape_cast %12 : vector<16x1xf32> to vector<1x16x1xf32>
    %14 = vector.broadcast %4 : vector<1x1x128xf32> to vector<1x16x128xf32>
    %15 = vector.broadcast %13 : vector<1x16x1xf32> to vector<1x16x128xf32>
    %16 = arith.mulf %14, %15 : vector<1x16x128xf32>
    %17 = arith.addf %11, %16 : vector<1x16x128xf32>
    %18 = vector.extract_strided_slice %6 {offsets = [0, 2], sizes = [16, 1], strides = [1, 1]} : vector<16x3xf32> to vector<16x1xf32>
    %19 = vector.shape_cast %18 : vector<16x1xf32> to vector<1x16x1xf32>
    %20 = vector.broadcast %5 : vector<1x1x128xf32> to vector<1x16x128xf32>
    %21 = vector.broadcast %19 : vector<1x16x1xf32> to vector<1x16x128xf32>
    %22 = arith.mulf %20, %21 : vector<1x16x128xf32>
    %23 = arith.addf %17, %22 : vector<1x16x128xf32>
    %cst = arith.constant dense<0xFF800000> : vector<1x16xf32>
    %24 = vector.multi_reduction <maximumf>, %23, %cst [2] : vector<1x16x128xf32> to vector<1x16xf32>
    %c0_9 = arith.constant 0 : index
    %c0_10 = arith.constant 0 : index
    %25 = vector.load %arg5[%c0_9, %c0_10] : memref<1x32xf32, #tpu.memory_space<vmem>>, vector<1x16xf32>
    %26 = arith.maximumf %25, %24 : vector<1x16xf32>
    %c0_11 = arith.constant 0 : index
    %c0_12 = arith.constant 0 : index
    %27 = vector.load %arg5[%c0_11, %c0_12] : memref<1x32xf32, #tpu.memory_space<vmem>>, vector<1x16xf32>
    tpu.vector_store %arg5[%c0_11, %c0_12], %26 {strides = array<i32>} : memref<1x32xf32, #tpu.memory_space<vmem>>, vector<1x16xf32>,
    %c16 = arith.constant 16 : index
    %c0_13 = arith.constant 0 : index
    %28 = vector.load %arg3[%c16, %c0_13] : memref<32x3xf32, #tpu.memory_space<vmem>>, vector<16x3xf32>
    %29 = vector.extract_strided_slice %28 {offsets = [0, 0], sizes = [16, 1], strides = [1, 1]} : vector<16x3xf32> to vector<16x1xf32>
    %30 = vector.shape_cast %29 : vector<16x1xf32> to vector<1x16x1xf32>
    %31 = vector.broadcast %3 : vector<1x1x128xf32> to vector<1x16x128xf32>
    %32 = vector.broadcast %30 : vector<1x16x1xf32> to vector<1x16x128xf32>
    %33 = arith.mulf %31, %32 : vector<1x16x128xf32>
    %34 = vector.extract_strided_slice %28 {offsets = [0, 1], sizes = [16, 1], strides = [1, 1]} : vector<16x3xf32> to vector<16x1xf32>
    %35 = vector.shape_cast %34 : vector<16x1xf32> to vector<1x16x1xf32>
    %36 = vector.broadcast %4 : vector<1x1x128xf32> to vector<1x16x128xf32>
    %37 = vector.broadcast %35 : vector<1x16x1xf32> to vector<1x16x128xf32>
    %38 = arith.mulf %36, %37 : vector<1x16x128xf32>
    %39 = arith.addf %33, %38 : vector<1x16x128xf32>
    %40 = vector.extract_strided_slice %28 {offsets = [0, 2], sizes = [16, 1], strides = [1, 1]} : vector<16x3xf32> to vector<16x1xf32>
    %41 = vector.shape_cast %40 : vector<16x1xf32> to vector<1x16x1xf32>
    %42 = vector.broadcast %5 : vector<1x1x128xf32> to vector<1x16x128xf32>
    %43 = vector.broadcast %41 : vector<1x16x1xf32> to vector<1x16x128xf32>
    %44 = arith.mulf %42, %43 : vector<1x16x128xf32>
    %45 = arith.addf %39, %44 : vector<1x16x128xf32>
    %cst_14 = arith.constant dense<0xFF800000> : vector<1x16xf32>
    %46 = vector.multi_reduction <maximumf>, %45, %cst_14 [2] : vector<1x16x128xf32> to vector<1x16xf32>
    %c0_15 = arith.constant 0 : index
    %c16_16 = arith.constant 16 : index
    %47 = vector.load %arg5[%c0_15, %c16_16] : memref<1x32xf32, #tpu.memory_space<vmem>>, vector<1x16xf32>
    %48 = arith.maximumf %47, %46 : vector<1x16xf32>
    %c0_17 = arith.constant 0 : index
    %c16_18 = arith.constant 16 : index
    %49 = vector.load %arg5[%c0_17, %c16_18] : memref<1x32xf32, #tpu.memory_space<vmem>>, vector<1x16xf32>
    tpu.vector_store %arg5[%c0_17, %c16_18], %48 {strides = array<i32>} : memref<1x32xf32, #tpu.memory_space<vmem>>, vector<1x16xf32>,
    %c1_i32 = arith.constant 1 : i32
    %50 = arith.cmpi eq, %arg1, %c1_i32 : i32
    %51 = arith.extui %50 : i1 to i32
    %c0_i32_19 = arith.constant 0 : i32
    %52 = arith.cmpi ne, %51, %c0_i32_19 : i32
    scf.if %52 {
      %c0_20 = arith.constant 0 : index
      %c0_21 = arith.constant 0 : index
      %53 = vector.load %arg5[%c0_20, %c0_21] : memref<1x32xf32, #tpu.memory_space<vmem>>, vector<1x32xf32>
      %54 = vector.shape_cast %53 : vector<1x32xf32> to vector<1x1x32xf32>
      %c0_22 = arith.constant 0 : index
      %c0_23 = arith.constant 0 : index
      %c0_24 = arith.constant 0 : index
      %55 = vector.load %arg4[%c0_22, %c0_23, %c0_24] : memref<1x1x32xf32, #tpu.memory_space<vmem>>, vector<1x1x32xf32>
      tpu.vector_store %arg4[%c0_22, %c0_23, %c0_24], %54 {strides = array<i32>} : memref<1x1x32xf32, #tpu.memory_space<vmem>>, vector<1x1x32xf32>,
    } else {
    }
    return
  }
  func.func @transform_0(%arg0: i32, %arg1: i32) -> (i32, i32, i32) {
    %c0_i32 = arith.constant 0 : i32
    %c0_i32_0 = arith.constant 0 : i32
    return %arg0, %c0_i32, %arg1 : i32, i32, i32
  }
  func.func @transform_1(%arg0: i32, %arg1: i32) -> (i32, i32) {
    %c0_i32 = arith.constant 0 : i32
    %c0_i32_0 = arith.constant 0 : i32
    %c0_i32_1 = arith.constant 0 : i32
    return %c0_i32, %c0_i32_0 : i32, i32
  }
  func.func @transform_2(%arg0: i32, %arg1: i32) -> (i32, i32, i32) {
    %c0_i32 = arith.constant 0 : i32
    %c0_i32_0 = arith.constant 0 : i32
    %c0_i32_1 = arith.constant 0 : i32
    return %arg0, %c0_i32, %c0_i32_0 : i32, i32, i32
  }
}

</mosaic_0001>

<llo_original>
// kernel: tpu_custom_call.1
$region0: #{tpu_custom_call.1}
  #allocation0 [shape = 'u32[]', space=smem, size = 0x4, offset = 0x4, fixed_abs, tag = 'smem constant byte address 0x4 - core index']
  #allocation1 [shape = 'u32[72,128]{1,0:T(1,128)}', space=vmem, size = 0x9000, scoped, tag = 'internal scratch']
  #allocation2 [shape = 'f32[1,32]{1,0:T(1,128)}', space=vmem, size = 0x200, scoped, tag = 'scratch operand']
  %s0 = inlined_call_operand.vmem [shape: f32[2,3,256], index: 0, kind: input, shape index: {}]
  %s1 = inlined_call_operand.vmem [shape: f32[32,3], index: 1, kind: input, shape index: {}]
  %s2 = inlined_call_operand.hbm [shape: f32[2,1,32], index: 2, kind: output, shape index: {}]
  %s3 = sld [smem:[#allocation0]]
  $region49: #{tpu_custom_call.1} parent=0
    _
  %s5 = ssub.s32 1, %s3
  %s6 = scalar_select 0, %s5, %s3
  $region1: #{tpu_custom_call.1} parent=0
    #allocation3 [shape = 'u8[1024]{0}', space=vmem, size = 0x400, scoped, tag = 'output window, operand 0']
    #allocation4 [shape = 's32[2]{0}', space=sflag, size = 0x8, scoped, tag = 'scoped memory for tpu_custom_call.1']
    %7 = vsyncpa [#allocation4], 0
    %s8 = scalar_lea.sflag [#allocation4], 1
    %9 = vsyncpa %s8, 0
    loop: start=0, step=1, limit=6
    $region2: #{tpu_custom_call.1} parent=1 // loop_pre_header
      _
    $region3: #{tpu_custom_call.1} parent=1 // loop_header
      %s11 = sphi 0, %s15
      %p12 = scmp.ge.s32.totalorder %s11, 6
      %s18 = sphi 0, %s30
      %s19 = sphi 0, %s26
      %s20 = sphi 0, %s18
      %s21 = sphi 0, %s19
      %s22 = sphi 0, %s20
      %s23 = sphi 0, %s21
      %s35 = sphi 0, %s37
      %s38 = sphi 0, %s35
      %s39 = sphi 0, %s38
      %s55 = sphi 0, %s39
      %s59 = sphi 0, %s59
      %s61 = sphi 0, %s59
      %s62 = sphi 0, %s61
      %s76 = sphi 0, %s62
      %s82 = sphi 0, %s84
      %s85 = sphi 0, %s82
      %s86 = sphi 0, %s85
      %s102 = sphi 0, %s86
    $region4: #{tpu_custom_call.1} parent=1 // loop_header_branch
      %14 = sbr.rel (%p12) target = $region8
    $region5: #{tpu_custom_call.1} parent=1 // loop_body
      %s16 = ssub.s32 %s11, 1
      %s17 = ssub.s32 %s11, 2
      %s24 = sadd.s32 1, %s19
      %p25 = scmp.ge.s32.totalorder %s24, 2
      %s26 = scalar_select %p25, 0, %s24
      %s27 = sadd.s32 1, %s18
      %s28 = scalar_select %p25, %s27, %s18
      %p29 = scmp.ge.s32.totalorder %s28, 2
      %s30 = scalar_select %p29, 0, %s28
      %s31 = ssub.s32 %s18, %s30
      %s32 = ssub.s32 %s19, %s26
      %s33 = sor.u32 %s31, %s32
      %p34 = scmp.eq.s32.totalorder %s33, 0
      %s36 = sadd.s32 %s35, 1
      %s37 = scalar_select %p34, %s35, %s36
      %p40 = pneg %p34
      %p41 = scmp.eq.s32.totalorder %s11, 3
      %p42 = por %p40, %p41
      %p43 = scmp.ne.s32.totalorder %s35, %s38
      %p44 = scmp.eq.s32.totalorder %s11, 0
      %p45 = por %p43, %p44
      %p46 = scmp.ne.s32.totalorder %s35, %s38
      %p47 = scmp.eq.s32.totalorder %s16, 3
      %p48 = por %p46, %p47
      %p49 = scmp.ne.s32.totalorder %s38, %s39
      %p50 = scmp.eq.s32.totalorder %s16, 0
      %p51 = por %p49, %p50
      %p52 = scmp.ne.s32.totalorder %s38, %s39
      %p53 = scmp.eq.s32.totalorder %s17, 3
      %p54 = por %p52, %p53
      %p56 = scmp.ne.s32.totalorder %s39, %s55
      %p57 = scmp.eq.s32.totalorder %s17, 0
      %p58 = por %p56, %p57
      %s60 = sadd.s32 %s59, 1
      %p63 = scmp.eq.s32.totalorder %s11, 3
      %p64 = scmp.ne.s32.totalorder %s59, %s61
      %p65 = scmp.eq.s32.totalorder %s11, 0
      %p66 = por %p64, %p65
      %p67 = scmp.ne.s32.totalorder %s59, %s61
      %p68 = scmp.eq.s32.totalorder %s16, 3
      %p69 = por %p67, %p68
      %p70 = scmp.ne.s32.totalorder %s61, %s62
      %p71 = scmp.eq.s32.totalorder %s16, 0
      %p72 = por %p70, %p71
      %p73 = scmp.ne.s32.totalorder %s61, %s62
      %p74 = scmp.eq.s32.totalorder %s17, 3
      %p75 = por %p73, %p74
      %p77 = scmp.ne.s32.totalorder %s62, %s76
      %p78 = scmp.eq.s32.totalorder %s17, 0
      %p79 = por %p77, %p78
      %s80 = ssub.s32 %s18, %s30
      %p81 = scmp.eq.s32.totalorder %s80, 0
      %s83 = sadd.s32 %s82, 1
      %s84 = scalar_select %p81, %s82, %s83
      %p87 = pneg %p81
      %p88 = scmp.eq.s32.totalorder %s11, 3
      %p89 = por %p87, %p88
      %p90 = scmp.ne.s32.totalorder %s82, %s85
      %p91 = scmp.eq.s32.totalorder %s11, 0
      %p92 = por %p90, %p91
      %p93 = scmp.ne.s32.totalorder %s82, %s85
      %p94 = scmp.eq.s32.totalorder %s16, 3
      %p95 = por %p93, %p94
      %p96 = scmp.ne.s32.totalorder %s85, %s86
      %p97 = scmp.eq.s32.totalorder %s16, 0
      %p98 = por %p96, %p97
      %p99 = scmp.ne.s32.totalorder %s85, %s86
      %p100 = scmp.eq.s32.totalorder %s17, 3
      %p101 = por %p99, %p100
      %p103 = scmp.ne.s32.totalorder %s86, %s102
      %p104 = scmp.eq.s32.totalorder %s17, 0
      %p105 = por %p103, %p104
      %p106 = scmp.le.s32.totalorder 1, %s11
      %p107 = scmp.lt.s32.totalorder %s11, 5
      %p108 = pnand %p106, %p107
      %p109 = pneg %p108
      // Predicated region
      $region9: #{tpu_custom_call.1} parent=5 // pred_check
        _
      $region10: #{tpu_custom_call.1} parent=5 // pred_check_branch
        %111 = sbr.rel (%p108) target = $region12
      $region11: #{tpu_custom_call.1} parent=5 // pred_region
        %s112 = ssub.s32 %s11, 1
        // Predicated region
        $region13: #{tpu_custom_call.1} parent=11 // pred_check
          %p113 = pneg %p72
        $region14: #{tpu_custom_call.1} parent=11 // pred_check_branch
          %115 = sbr.rel (%p113) target = $region16
        $region15: #{tpu_custom_call.1} parent=11 // pred_region
          _
        $region16: #{tpu_custom_call.1} parent=11 // pred_fallthru
          _
      $region12: #{tpu_custom_call.1} parent=5 // pred_fallthru
        _
      %p116 = scmp.lt.s32.totalorder %s11, 4
      // Predicated region
      $region17: #{tpu_custom_call.1} parent=5 // pred_check
        %p117 = pneg %p116
      $region18: #{tpu_custom_call.1} parent=5 // pred_check_branch
        %119 = sbr.rel (%p117) target = $region20
      $region19: #{tpu_custom_call.1} parent=5 // pred_region
        // Predicated region
        $region21: #{tpu_custom_call.1} parent=19 // pred_check
          %p120 = pneg %p45
        $region22: #{tpu_custom_call.1} parent=19 // pred_check_branch
          %122 = sbr.rel (%p120) target = $region24
        $region23: #{tpu_custom_call.1} parent=19 // pred_region
          %p123 = scmp.lt.s32.totalorder %s18, 1
          %s124 = scalar_select %p123, %s18, 1
          %p125 = scmp.lt.s32.totalorder %s19, 1
          %s126 = scalar_select %p125, %s19, 1
          %s127 = smul.addr %s124, 2
          %s128 = sadd.s32 %s126, %s127
          %s129 = smul.addr %s128, 4
          %s130 = scalar_lea.vmem %s0, %s129
        $region24: #{tpu_custom_call.1} parent=19 // pred_fallthru
          _
      $region20: #{tpu_custom_call.1} parent=5 // pred_fallthru
        _
      %p131 = scmp.le.s32.totalorder 1, %s11
      %p132 = scmp.lt.s32.totalorder %s11, 5
      %p133 = pnand %p131, %p132
      %p134 = pneg %p133
      // Predicated region
      $region25: #{tpu_custom_call.1} parent=5 // pred_check
        _
      $region26: #{tpu_custom_call.1} parent=5 // pred_check_branch
        %136 = sbr.rel (%p133) target = $region28
      $region27: #{tpu_custom_call.1} parent=5 // pred_region
        %s137 = ssub.s32 %s11, 1
        %p138 = scmp.lt.s32.totalorder %s20, 1
        %s139 = scalar_select %p138, %s20, 1
        %p140 = scmp.lt.s32.totalorder %s21, 1
        %s141 = scalar_select %p140, %s21, 1
        %s142 = smul.addr %s139, 2
        %s143 = sadd.s32 %s141, %s142
        %s144 = smul.addr %s143, 4
        %s145 = scalar_lea.vmem %s0, %s144
        %p146 = pneg %p51
        %p147 = pneg %p48
        %p148 = pneg %p72
        %p149 = pneg %p69
        %p150 = pneg %p98
        %p151 = pneg %p95
        %s152 = sand.u32 %s85, 1
        %s153 = scalar_lea.sflag [#allocation4], %s152
        %s154 = sand.u32 %s85, 1
        %s155 = scalar_lea.vmem [#allocation3], %s154
        %p156 = scmp.lt.s32.totalorder %s20, 1
        %s157 = scalar_select %p156, %s20, 1
        %p158 = scmp.lt.s32.totalorder %s21, 1
        %s159 = scalar_select %p158, %s21, 1
        %s160 = smul.addr %s157, 2
        %s161 = sadd.s32 %s159, %s160
        %s162 = smul.addr %s161, 4
        %s163 = scalar_lea.vmem %s0, %s162
        %p164 = scmp.eq.s32.totalorder %s21, 0
        // Predicated region
        $region29: #{tpu_custom_call.1} parent=27 // pred_check
          %p165 = pneg %p164
        $region30: #{tpu_custom_call.1} parent=27 // pred_check_branch
          %167 = sbr.rel (%p165) target = $region32
        $region31: #{tpu_custom_call.1} parent=27 // pred_region
          %vm168 = vcmask 253952
          %169 = vst.msk [vmem:[#allocation2] sm:$0x1] %vm168, -inf
        $region32: #{tpu_custom_call.1} parent=27 // pred_fallthru
          _
        %v170 = vld [vmem:[%s163] sm:$0x1]
        %v171 = vld [vmem:[%s163 + $0x1] sm:$0x1]
        %v172 = vld [vmem:[%s163 + $0x2] sm:$0x1]
        %v173 = vld [vmem:[%s1] sm:$0xff]
        %v174 = vld [vmem:[%s1 + $0x8] sm:$0xff]
        %v175 = vperm.slane %v170, 0
        %177 = vset.pattern.permute.xlu0 0
        %178 = vperm.xlu0 %177, %v173
        %v179 = vpop.permute.xlu0 %178
        %182 = vset.pattern.permute.xlu0 0
        %183 = vperm.xlu0 %182, %v174
        %v184 = vpop.permute.xlu0 %183
        %v186 = vmul.f32 %v175, %v179
        %v187 = vmul.f32 %v175, %v184
        %v188 = vperm.slane %v171, 0
        %189 = vset.pattern.permute.xlu0 1
        %190 = vperm.xlu0 %189, %v173
        %v191 = vpop.permute.xlu0 %190
        %193 = vset.pattern.permute.xlu0 1
        %194 = vperm.xlu0 %193, %v174
        %v195 = vpop.permute.xlu0 %194
        %v197 = vmul.f32 %v188, %v191
        %v198 = vmul.f32 %v188, %v195
        %v199 = vadd.f32 %v186, %v197
        %v200 = vadd.f32 %v187, %v198
        %v201 = vperm.slane %v172, 0
        %202 = vset.pattern.permute.xlu0 2
        %203 = vperm.xlu0 %202, %v173
        %v204 = vpop.permute.xlu0 %203
        %206 = vset.pattern.permute.xlu0 2
        %207 = vperm.xlu0 %206, %v174
        %v208 = vpop.permute.xlu0 %207
        %v210 = vmul.f32 %v201, %v204
        %v211 = vmul.f32 %v201, %v208
        %v212 = vadd.f32 %v199, %v210
        %v213 = vadd.f32 %v200, %v211
        %214 = vmax.xlane.f32.xlu0 %v212
        %v215 = vpop.xlane.xlu0 %214
        %216 = vmax.xlane.f32.xlu0 %v213
        %v217 = vpop.xlane.xlu0 %216
        %v218 = vld [vmem:[#allocation2] sm:$0x1]
        %v221 = vperm.slane %v215, 0
        %v222 = vperm.slane %v215, 1
        %v223 = vperm.slane %v215, 2
        %v224 = vperm.slane %v215, 3
        %v225 = vperm.slane %v215, 4
        %v226 = vperm.slane %v215, 5
        %v227 = vperm.slane %v215, 6
        %v228 = vperm.slane %v215, 7
        %v229 = vperm.slane %v217, 0
        %v230 = vperm.slane %v217, 1
        %v231 = vperm.slane %v217, 2
        %v232 = vperm.slane %v217, 3
        %v233 = vperm.slane %v217, 4
        %v234 = vperm.slane %v217, 5
        %v235 = vperm.slane %v217, 6
        %v236 = vperm.slane %v217, 7
        %237 = vst [vmem:[#allocation1] ss:$9 sm:$0xff] %v221
        %s238 = scalar_lea.vmem [#allocation1], 1
        %239 = vst [vmem:[%s238] ss:$9 sm:$0xff] %v222
        %s240 = scalar_lea.vmem [#allocation1], 2
        %241 = vst [vmem:[%s240] ss:$9 sm:$0xff] %v223
        %s242 = scalar_lea.vmem [#allocation1], 3
        %243 = vst [vmem:[%s242] ss:$9 sm:$0xff] %v224
        %s244 = scalar_lea.vmem [#allocation1], 4
        %245 = vst [vmem:[%s244] ss:$9 sm:$0xff] %v225
        %s246 = scalar_lea.vmem [#allocation1], 5
        %247 = vst [vmem:[%s246] ss:$9 sm:$0xff] %v226
        %s248 = scalar_lea.vmem [#allocation1], 6
        %249 = vst [vmem:[%s248] ss:$9 sm:$0xff] %v227
        %s250 = scalar_lea.vmem [#allocation1], 7
        %251 = vst [vmem:[%s250] ss:$9 sm:$0xff] %v228
        %v252 = vld [vmem:[#allocation1] sm:$0xff]
        %253 = vst [vmem:[#allocation1] ss:$9 sm:$0xff] %v229
        %254 = vst [vmem:[%s238] ss:$9 sm:$0xff] %v230
        %255 = vst [vmem:[%s240] ss:$9 sm:$0xff] %v231
        %256 = vst [vmem:[%s242] ss:$9 sm:$0xff] %v232
        %257 = vst [vmem:[%s244] ss:$9 sm:$0xff] %v233
        %258 = vst [vmem:[%s246] ss:$9 sm:$0xff] %v234
        %259 = vst [vmem:[%s248] ss:$9 sm:$0xff] %v235
        %260 = vst [vmem:[%s250] ss:$9 sm:$0xff] %v236
        %v261 = vld [vmem:[#allocation1] sm:$0xff]
        %262 = vset.pattern.permute.xlu0 0
        %263 = vperm.xlu0 %262, %v252
        %v264 = vpop.permute.xlu0 %263
        %265 = vset.pattern.permute.xlu0 0
        %266 = vperm.xlu0 %265, %v261
        %v267 = vpop.permute.xlu0 %266
        %v268 = vlaneseq
        %v269 = vand.u32 %v268, 127
        %v270 = vperm.slane %v264, %v269
        %v271 = vadd.s32 %v269, 4294967288
        %v272 = vperm.slane %v267, %v271
        %vm273 = vcmask 130112
        %v274 = vsel %vm273, %v272, %v270
        %v276 = vmax.f32 %v218, %v274
        %vm277 = vcmask 122880
        %278 = vst.msk [vmem:[#allocation2] sm:$0x1] %vm277, %v276
        %v279 = vld [vmem:[%s1 + $0x10] sm:$0xff]
        %v280 = vld [vmem:[%s1 + $0x18] sm:$0xff]
        %282 = vset.pattern.permute.xlu0 0
        %283 = vperm.xlu0 %282, %v279
        %v284 = vpop.permute.xlu0 %283
        %287 = vset.pattern.permute.xlu0 0
        %288 = vperm.xlu0 %287, %v280
        %v289 = vpop.permute.xlu0 %288
        %v291 = vmul.f32 %v175, %v284
        %v292 = vmul.f32 %v175, %v289
        %293 = vset.pattern.permute.xlu0 1
        %294 = vperm.xlu0 %293, %v279
        %v295 = vpop.permute.xlu0 %294
        %297 = vset.pattern.permute.xlu0 1
        %298 = vperm.xlu0 %297, %v280
        %v299 = vpop.permute.xlu0 %298
        %v301 = vmul.f32 %v188, %v295
        %v302 = vmul.f32 %v188, %v299
        %v303 = vadd.f32 %v291, %v301
        %v304 = vadd.f32 %v292, %v302
        %305 = vset.pattern.permute.xlu0 2
        %306 = vperm.xlu0 %305, %v279
        %v307 = vpop.permute.xlu0 %306
        %309 = vset.pattern.permute.xlu0 2
        %310 = vperm.xlu0 %309, %v280
        %v311 = vpop.permute.xlu0 %310
        %v313 = vmul.f32 %v201, %v307
        %v314 = vmul.f32 %v201, %v311
        %v315 = vadd.f32 %v303, %v313
        %v316 = vadd.f32 %v304, %v314
        %317 = vmax.xlane.f32.xlu0 %v315
        %v318 = vpop.xlane.xlu0 %317
        %319 = vmax.xlane.f32.xlu0 %v316
        %v320 = vpop.xlane.xlu0 %319
        %v321 = vld [vmem:[#allocation2] sm:$0x1]
        %v324 = vperm.slane %v318, 0
        %v325 = vperm.slane %v318, 1
        %v326 = vperm.slane %v318, 2
        %v327 = vperm.slane %v318, 3
        %v328 = vperm.slane %v318, 4
        %v329 = vperm.slane %v318, 5
        %v330 = vperm.slane %v318, 6
        %v331 = vperm.slane %v318, 7
        %v332 = vperm.slane %v320, 0
        %v333 = vperm.slane %v320, 1
        %v334 = vperm.slane %v320, 2
        %v335 = vperm.slane %v320, 3
        %v336 = vperm.slane %v320, 4
        %v337 = vperm.slane %v320, 5
        %v338 = vperm.slane %v320, 6
        %v339 = vperm.slane %v320, 7
        %340 = vst [vmem:[#allocation1] ss:$9 sm:$0xff] %v324
        %s341 = scalar_lea.vmem [#allocation1], 1
        %342 = vst [vmem:[%s341] ss:$9 sm:$0xff] %v325
        %s343 = scalar_lea.vmem [#allocation1], 2
        %344 = vst [vmem:[%s343] ss:$9 sm:$0xff] %v326
        %s345 = scalar_lea.vmem [#allocation1], 3
        %346 = vst [vmem:[%s345] ss:$9 sm:$0xff] %v327
        %s347 = scalar_lea.vmem [#allocation1], 4
        %348 = vst [vmem:[%s347] ss:$9 sm:$0xff] %v328
        %s349 = scalar_lea.vmem [#allocation1], 5
        %350 = vst [vmem:[%s349] ss:$9 sm:$0xff] %v329
        %s351 = scalar_lea.vmem [#allocation1], 6
        %352 = vst [vmem:[%s351] ss:$9 sm:$0xff] %v330
        %s353 = scalar_lea.vmem [#allocation1], 7
        %354 = vst [vmem:[%s353] ss:$9 sm:$0xff] %v331
        %v355 = vld [vmem:[#allocation1] sm:$0xff]
        %356 = vst [vmem:[#allocation1] ss:$9 sm:$0xff] %v332
        %357 = vst [vmem:[%s341] ss:$9 sm:$0xff] %v333
        %358 = vst [vmem:[%s343] ss:$9 sm:$0xff] %v334
        %359 = vst [vmem:[%s345] ss:$9 sm:$0xff] %v335
        %360 = vst [vmem:[%s347] ss:$9 sm:$0xff] %v336
        %361 = vst [vmem:[%s349] ss:$9 sm:$0xff] %v337
        %362 = vst [vmem:[%s351] ss:$9 sm:$0xff] %v338
        %363 = vst [vmem:[%s353] ss:$9 sm:$0xff] %v339
        %v364 = vld [vmem:[#allocation1] sm:$0xff]
        %365 = vset.pattern.permute.xlu0 0
        %366 = vperm.xlu0 %365, %v355
        %v367 = vpop.permute.xlu0 %366
        %368 = vset.pattern.permute.xlu0 0
        %369 = vperm.xlu0 %368, %v364
        %v370 = vpop.permute.xlu0 %369
        %v371 = vadd.s32 %v269, 4294967280
        %v372 = vperm.slane %v367, %v371
        %v373 = vadd.s32 %v269, 4294967272
        %v374 = vperm.slane %v370, %v373
        %vm375 = vcmask 261312
        %v376 = vsel %vm375, %v374, %v372
        %v378 = vmax.f32 %v321, %v376
        %vm379 = vcmask 254080
        %380 = vst.msk [vmem:[#allocation2] sm:$0x1] %vm379, %v378
        %p381 = scmp.eq.s32.totalorder %s21, 1
        // Predicated region
        $region33: #{tpu_custom_call.1} parent=27 // pred_check
          %p382 = pneg %p381
        $region34: #{tpu_custom_call.1} parent=27 // pred_check_branch
          %384 = sbr.rel (%p382) target = $region36
        $region35: #{tpu_custom_call.1} parent=27 // pred_region
          %v385 = vld [vmem:[#allocation2] sm:$0x1]
          %vm386 = vcmask 253952
          %387 = vst.msk [vmem:[%s155] sm:$0x1] %vm386, %v385
        $region36: #{tpu_custom_call.1} parent=27 // pred_fallthru
          _
        %s388 = sand.u32 %s85, 1
        %s389 = scalar_lea.sflag [#allocation4], %s388
        %s390 = sand.u32 %s85, 1
        %s391 = scalar_lea.vmem [#allocation3], %s390
        // Predicated region
        $region37: #{tpu_custom_call.1} parent=27 // pred_check
          %p392 = pneg %p95
        $region38: #{tpu_custom_call.1} parent=27 // pred_check_branch
          %394 = sbr.rel (%p392) target = $region40
        $region39: #{tpu_custom_call.1} parent=27 // pred_region
          %396 = vsyncadd %s389, 0
          %s397 = scalar_lea.hbm %s2, %s20
          %s399 = sshll.u32 %s391, 4
          %s400 = int_to_ptr.vmem [resolvable:$true] %s399
          %s401 = sshll.u32 %s397, 4
          %s402 = int_to_ptr.hbm [resolvable:$true] %s401
          %404 = dma.vmem_to_hbm [thread:$0]  %s400, 16, %s402, %s389
        $region40: #{tpu_custom_call.1} parent=27 // pred_fallthru
          _
      $region28: #{tpu_custom_call.1} parent=5 // pred_fallthru
        _
      %p405 = scmp.le.s32.totalorder 2, %s11
      // Predicated region
      $region41: #{tpu_custom_call.1} parent=5 // pred_check
        %p406 = pneg %p405
      $region42: #{tpu_custom_call.1} parent=5 // pred_check_branch
        %408 = sbr.rel (%p406) target = $region44
      $region43: #{tpu_custom_call.1} parent=5 // pred_region
        %s409 = ssub.s32 %s11, 2
        // Predicated region
        $region45: #{tpu_custom_call.1} parent=43 // pred_check
          %p410 = pneg %p101
        $region46: #{tpu_custom_call.1} parent=43 // pred_check_branch
          %412 = sbr.rel (%p410) target = $region48
        $region47: #{tpu_custom_call.1} parent=43 // pred_region
          %s413 = sand.u32 %s86, 1
          %s414 = scalar_lea.sflag [#allocation4], %s413
          %s415 = sand.u32 %s86, 1
          %s416 = scalar_lea.vmem [#allocation3], %s415
          %418 = dma.done %s414, 16
        $region48: #{tpu_custom_call.1} parent=43 // pred_fallthru
          _
      $region44: #{tpu_custom_call.1} parent=5 // pred_fallthru
        _
    $region6: #{tpu_custom_call.1} parent=1 // loop_footer
      %s15 = sadd.s32 1, %s11
    $region7: #{tpu_custom_call.1} parent=1 // loop_footer_branch
      %10 = sbr.rel target = $region3
    $region8: #{tpu_custom_call.1} parent=1 // loop_exit
      _
    %419 = vsyncpa [#allocation4], 1
    %s420 = scalar_lea.sflag [#allocation4], 1
    %421 = vsyncpa %s420, 1

</llo_original>
